<compile_context>
chip_gen: v6e
topology: v6e:2x2x1
jax: 0.10.0
libtpu: 0.0.40
codegen_flags: <defaults>
</compile_context>

<pallas_src>
import math
import functools

import jax
import jax.numpy as jnp
from jax.experimental import pallas as pl
from jax.experimental.pallas import tpu as pltpu


def _ceil_to(x, m):
    return -(-int(x) // int(m)) * int(m)


def _ofdm_rate_kernel(hr_ref, hi_ref, fr_ref, fi_ref, rate_ref, *, K, noise):
    """Per-sample sum rate for one lane-dense block of samples.

    hr_ref, hi_ref : [K, Nt, S]  channel rows   (user i on axis 0, samples on lanes)
    fr_ref, fi_ref : [K, Nt, S]  precoder cols  (user j on axis 0, samples on lanes)
    rate_ref       : [1, S]      sum_i log2(1 + SINR_i) per sample (this block)
    """
    inv_ln2 = 1.0 / math.log(2.0)
    rate = None
    for i in range(K):
        hri = hr_ref[i]                       # [Nt, S]
        hii = hi_ref[i]                       # [Nt, S]
        sig = None
        total = None
        for j in range(K):
            frj = fr_ref[j]                   # [Nt, S]
            fij = fi_ref[j]                   # [Nt, S]
            # (Hs @ F) entry (i, j): real & imag parts, reduced over Nt (sublanes).
            re = jnp.sum(hri * frj - hii * fij, axis=0, keepdims=True)   # [1, S]
            im = jnp.sum(hri * fij + hii * frj, axis=0, keepdims=True)   # [1, S]
            p = re * re + im * im
            total = p if total is None else total + p
            if j == i:
                sig = p
        sinr = sig / (noise + (total - sig))
        r_i = jnp.log(1.0 + sinr) * inv_ln2
        rate = r_i if rate is None else rate + r_i
    rate_ref[...] = rate


def my_loss_ofdm(H0, out, parm_set, *, block_samples=1024):
    """JAX/Pallas equivalent of MyLoss_OFDM.forward."""
    _Nc, Nt, _Nr, snr, _B, K = parm_set
    Nt, K = int(Nt), int(K)

    num = out.shape[0]
    Nc = H0.shape[2]                 # torch code re-derives Nc from H after permute
    noise = 1.0 / float(snr)

    # ---- lane-dense relayout: flattened sample axis (num*Nc) goes last ------
    # H0: [num, K, Nc, 2*Nt] -> Hr/Hi: [K, Nt, num*Nc]  (sample = n*Nc + c)
    Hr = jnp.transpose(H0[:, :, :, 0:Nt].astype(jnp.float32),
                       (1, 3, 0, 2)).reshape(K, Nt, num * Nc)
    Hi = jnp.transpose(H0[:, :, :, Nt:2 * Nt].astype(jnp.float32),
                       (1, 3, 0, 2)).reshape(K, Nt, num * Nc)
    # out -> Fr/Fi: [num, Nc, Nt, K] -> [K, Nt, num*Nc]
    Fr0 = out[:, 0:K * Nt * Nc].astype(jnp.float32).reshape(num, Nc, Nt, K)
    Fi0 = out[:, K * Nt * Nc:2 * K * Nt * Nc].astype(jnp.float32).reshape(num, Nc, Nt, K)
    Fr = jnp.transpose(Fr0, (3, 2, 0, 1)).reshape(K, Nt, num * Nc)
    Fi = jnp.transpose(Fi0, (3, 2, 0, 1)).reshape(K, Nt, num * Nc)

    # ---- pad the sample axis (zero-padded samples contribute exactly 0) -----
    s_total = num * Nc
    s_blk = _ceil_to(min(int(block_samples), s_total), 128)
    s_pad = _ceil_to(s_total, s_blk)
    n_blocks = s_pad // s_blk
    if s_pad != s_total:
        padcfg = ((0, 0), (0, 0), (0, s_pad - s_total))
        Hr = jnp.pad(Hr, padcfg)
        Hi = jnp.pad(Hi, padcfg)
        Fr = jnp.pad(Fr, padcfg)
        Fi = jnp.pad(Fi, padcfg)

    kernel = functools.partial(_ofdm_rate_kernel, K=K, noise=noise)
    in_spec = pl.BlockSpec((K, Nt, s_blk), lambda b: (0, 0, b))

    per_sample_rate = pl.pallas_call(
        kernel,
        out_shape=jax.ShapeDtypeStruct((1, s_pad), jnp.float32),
        grid_spec=pltpu.PrefetchScalarGridSpec(
            num_scalar_prefetch=0,
            grid=(n_blocks,),
            in_specs=[in_spec, in_spec, in_spec, in_spec],
            out_specs=pl.BlockSpec((1, s_blk), lambda b: (0, b)),
        ),
        compiler_params=pltpu.CompilerParams(
            dimension_semantics=("parallel",)),
    )(Hr, Hi, Fr, Fi)

    # Final reduction / scaling in the wrapper (tree-sum in f32).
    return -jnp.sum(per_sample_rate) / num / Nc


def _reference_loss(H0, out, parm_set):
    """Pure-JAX reference mirroring the PyTorch code (for verification)."""
    Nc, Nt, _Nr, snr, _B, K = parm_set
    Nc, Nt, K = int(Nc), int(Nt), int(K)
    num = out.shape[0]
    H = jnp.transpose(H0, (0, 2, 1, 3))
    Nc = H.shape[1]
    Hr = H[..., 0:Nt]
    Hi = H[..., Nt:2 * Nt]
    Hs = jnp.concatenate([Hr, Hi], axis=-1)                         # [num,Nc,K,2Nt]
    Fr = out[:, 0:K * Nt * Nc].reshape(num, Nc, Nt, K)
    Fi = out[:, K * Nt * Nc:2 * K * Nt * Nc].reshape(num, Nc, Nt, K)
    Ftop = jnp.concatenate([Fr, Fi], axis=-1)
    Fbot = jnp.concatenate([-Fi, Fr], axis=-1)
    Fm = jnp.concatenate([Ftop, Fbot], axis=-2)                     # [num,Nc,2Nt,2K]
    Hk = jnp.einsum('ncij,ncjk->ncik', Hs, Fm)
    noise = 1.0 / float(snr)
    R = 0.0
    for i in range(K):
        signal = Hk[:, :, i, i] ** 2 + Hk[:, :, i, i + K] ** 2
        interference = jnp.zeros((num, Nc), jnp.float32)
        for j in range(K):
            if j != i:
                interference = interference + Hk[:, :, i, j] ** 2 + Hk[:, :, i, j + K] ** 2
        SINR = signal / (noise + interference)
        R = R + jnp.sum(jnp.log2(1.0 + SINR))
    return -R / num / Nc


if __name__ == "__main__":
    # Small shapes consistent with the module defaults (K=2, Nc=32, Nt=64).
    num = 16     # batch
    K = 2        # users
    Nc = 32      # subcarriers
    Nt = 64      # tx antennas
    Nr = 1
    SNR_dB = 10
    snr = 10 ** (SNR_dB / 10) / K
    B = 40
    parm_set = (Nc, Nt, Nr, snr, B, K)

    key = jax.random.PRNGKey(0)
    k1, k2 = jax.random.split(key)
    H0 = jax.random.normal(k1, (num, K, Nc, 2 * Nt), dtype=jnp.float32)
    out = jax.random.normal(k2, (num, 2 * K * Nt * Nc), dtype=jnp.float32) * 0.1

    # block_samples=256 -> 2 grid blocks at these shapes (exercises the grid).
    loss = jax.block_until_ready(my_loss_ofdm(H0, out, parm_set, block_samples=256))
    ref = jax.block_until_ready(_reference_loss(H0, out, parm_set))
    assert jnp.allclose(loss, ref, rtol=1e-3, atol=1e-3), (loss, ref)

    print("KERNEL_OK")
</pallas_src>

<mosaic_0001>
module attributes {stable_mosaic.version = 11 : i64} {
  func.func @_ofdm_rate_kernel(%arg0: i32, %arg1: memref<2x64x256xf32, #tpu.memory_space<vmem>>, %arg2: memref<2x64x256xf32, #tpu.memory_space<vmem>>, %arg3: memref<2x64x256xf32, #tpu.memory_space<vmem>>, %arg4: memref<2x64x256xf32, #tpu.memory_space<vmem>>, %arg5: memref<1x256xf32, #tpu.memory_space<vmem>>) attributes {dimension_semantics = [#tpu.dimension_semantics<parallel>], iteration_bounds = array<i64: 2>, scalar_prefetch = 0 : i64, scratch_operands = 0 : i64, tpu.core_type = #tpu.core_type<tc>, window_params = [{transform_indices = @transform_0, window_bounds = array<i64: 2, 64, 256>}, {transform_indices = @transform_1, window_bounds = array<i64: 2, 64, 256>}, {transform_indices = @transform_2, window_bounds = array<i64: 2, 64, 256>}, {transform_indices = @transform_3, window_bounds = array<i64: 2, 64, 256>}, {transform_indices = @transform_4, window_bounds = array<i64: 1, 256>}]} {
    %c0 = arith.constant 0 : index
    %c0_0 = arith.constant 0 : index
    %c0_1 = arith.constant 0 : index
    %0 = vector.load %arg1[%c0, %c0_0, %c0_1] : memref<2x64x256xf32, #tpu.memory_space<vmem>>, vector<1x64x256xf32>
    %1 = vector.shape_cast %0 : vector<1x64x256xf32> to vector<64x256xf32>
    %c0_2 = arith.constant 0 : index
    %c0_3 = arith.constant 0 : index
    %c0_4 = arith.constant 0 : index
    %2 = vector.load %arg2[%c0_2, %c0_3, %c0_4] : memref<2x64x256xf32, #tpu.memory_space<vmem>>, vector<1x64x256xf32>
    %3 = vector.shape_cast %2 : vector<1x64x256xf32> to vector<64x256xf32>
    %c0_5 = arith.constant 0 : index
    %c0_6 = arith.constant 0 : index
    %c0_7 = arith.constant 0 : index
    %4 = vector.load %arg3[%c0_5, %c0_6, %c0_7] : memref<2x64x256xf32, #tpu.memory_space<vmem>>, vector<1x64x256xf32>
    %5 = vector.shape_cast %4 : vector<1x64x256xf32> to vector<64x256xf32>
    %c0_8 = arith.constant 0 : index
    %c0_9 = arith.constant 0 : index
    %c0_10 = arith.constant 0 : index
    %6 = vector.load %arg4[%c0_8, %c0_9, %c0_10] : memref<2x64x256xf32, #tpu.memory_space<vmem>>, vector<1x64x256xf32>
    %7 = vector.shape_cast %6 : vector<1x64x256xf32> to vector<64x256xf32>
    %8 = arith.mulf %1, %5 : vector<64x256xf32>
    %9 = arith.mulf %3, %7 : vector<64x256xf32>
    %10 = arith.subf %8, %9 : vector<64x256xf32>
    %cst = arith.constant dense<0.000000e+00> : vector<256xf32>
    %11 = vector.multi_reduction <add>, %10, %cst [0] : vector<64x256xf32> to vector<256xf32>
    %12 = vector.shape_cast %11 : vector<256xf32> to vector<1x256xf32>
    %13 = arith.mulf %1, %7 : vector<64x256xf32>
    %14 = arith.mulf %3, %5 : vector<64x256xf32>
    %15 = arith.addf %13, %14 : vector<64x256xf32>
    %cst_11 = arith.constant dense<0.000000e+00> : vector<256xf32>
    %16 = vector.multi_reduction <add>, %15, %cst_11 [0] : vector<64x256xf32> to vector<256xf32>
    %17 = vector.shape_cast %16 : vector<256xf32> to vector<1x256xf32>
    %18 = arith.mulf %12, %12 : vector<1x256xf32>
    %19 = arith.mulf %17, %17 : vector<1x256xf32>
    %20 = arith.addf %18, %19 : vector<1x256xf32>
    %c1 = arith.constant 1 : index
    %c0_12 = arith.constant 0 : index
    %c0_13 = arith.constant 0 : index
    %21 = vector.load %arg3[%c1, %c0_12, %c0_13] : memref<2x64x256xf32, #tpu.memory_space<vmem>>, vector<1x64x256xf32>
    %22 = vector.shape_cast %21 : vector<1x64x256xf32> to vector<64x256xf32>
    %c1_14 = arith.constant 1 : index
    %c0_15 = arith.constant 0 : index
    %c0_16 = arith.constant 0 : index
    %23 = vector.load %arg4[%c1_14, %c0_15, %c0_16] : memref<2x64x256xf32, #tpu.memory_space<vmem>>, vector<1x64x256xf32>
    %24 = vector.shape_cast %23 : vector<1x64x256xf32> to vector<64x256xf32>
    %25 = arith.mulf %1, %22 : vector<64x256xf32>
    %26 = arith.mulf %3, %24 : vector<64x256xf32>
    %27 = arith.subf %25, %26 : vector<64x256xf32>
    %cst_17 = arith.constant dense<0.000000e+00> : vector<256xf32>
    %28 = vector.multi_reduction <add>, %27, %cst_17 [0] : vector<64x256xf32> to vector<256xf32>
    %29 = vector.shape_cast %28 : vector<256xf32> to vector<1x256xf32>
    %30 = arith.mulf %1, %24 : vector<64x256xf32>
    %31 = arith.mulf %3, %22 : vector<64x256xf32>
    %32 = arith.addf %30, %31 : vector<64x256xf32>
    %cst_18 = arith.constant dense<0.000000e+00> : vector<256xf32>
    %33 = vector.multi_reduction <add>, %32, %cst_18 [0] : vector<64x256xf32> to vector<256xf32>
    %34 = vector.shape_cast %33 : vector<256xf32> to vector<1x256xf32>
    %35 = arith.mulf %29, %29 : vector<1x256xf32>
    %36 = arith.mulf %34, %34 : vector<1x256xf32>
    %37 = arith.addf %35, %36 : vector<1x256xf32>
    %38 = arith.addf %20, %37 : vector<1x256xf32>
    %39 = arith.subf %38, %20 : vector<1x256xf32>
    %cst_19 = arith.constant 2.000000e-01 : f32
    %40 = vector.broadcast %cst_19 : f32 to vector<1x256xf32>
    %41 = arith.addf %40, %39 : vector<1x256xf32>
    %42 = arith.divf %20, %41 : vector<1x256xf32>
    %cst_20 = arith.constant 1.000000e+00 : f32
    %43 = vector.broadcast %cst_20 : f32 to vector<1x256xf32>
    %44 = arith.addf %43, %42 : vector<1x256xf32>
    %45 = math.log %44 : vector<1x256xf32>
    %cst_21 = arith.constant 1.44269502 : f32
    %46 = vector.broadcast %cst_21 : f32 to vector<1x256xf32>
    %47 = arith.mulf %45, %46 : vector<1x256xf32>
    %c1_22 = arith.constant 1 : index
    %c0_23 = arith.constant 0 : index
    %c0_24 = arith.constant 0 : index
    %48 = vector.load %arg1[%c1_22, %c0_23, %c0_24] : memref<2x64x256xf32, #tpu.memory_space<vmem>>, vector<1x64x256xf32>
    %49 = vector.shape_cast %48 : vector<1x64x256xf32> to vector<64x256xf32>
    %c1_25 = arith.constant 1 : index
    %c0_26 = arith.constant 0 : index
    %c0_27 = arith.constant 0 : index
    %50 = vector.load %arg2[%c1_25, %c0_26, %c0_27] : memref<2x64x256xf32, #tpu.memory_space<vmem>>, vector<1x64x256xf32>
    %51 = vector.shape_cast %50 : vector<1x64x256xf32> to vector<64x256xf32>
    %c0_28 = arith.constant 0 : index
    %c0_29 = arith.constant 0 : index
    %c0_30 = arith.constant 0 : index
    %52 = vector.load %arg3[%c0_28, %c0_29, %c0_30] : memref<2x64x256xf32, #tpu.memory_space<vmem>>, vector<1x64x256xf32>
    %53 = vector.shape_cast %52 : vector<1x64x256xf32> to vector<64x256xf32>
    %c0_31 = arith.constant 0 : index
    %c0_32 = arith.constant 0 : index
    %c0_33 = arith.constant 0 : index
    %54 = vector.load %arg4[%c0_31, %c0_32, %c0_33] : memref<2x64x256xf32, #tpu.memory_space<vmem>>, vector<1x64x256xf32>
    %55 = vector.shape_cast %54 : vector<1x64x256xf32> to vector<64x256xf32>
    %56 = arith.mulf %49, %53 : vector<64x256xf32>
    %57 = arith.mulf %51, %55 : vector<64x256xf32>
    %58 = arith.subf %56, %57 : vector<64x256xf32>
    %cst_34 = arith.constant dense<0.000000e+00> : vector<256xf32>
    %59 = vector.multi_reduction <add>, %58, %cst_34 [0] : vector<64x256xf32> to vector<256xf32>
    %60 = vector.shape_cast %59 : vector<256xf32> to vector<1x256xf32>
    %61 = arith.mulf %49, %55 : vector<64x256xf32>
    %62 = arith.mulf %51, %53 : vector<64x256xf32>
    %63 = arith.addf %61, %62 : vector<64x256xf32>
    %cst_35 = arith.constant dense<0.000000e+00> : vector<256xf32>
    %64 = vector.multi_reduction <add>, %63, %cst_35 [0] : vector<64x256xf32> to vector<256xf32>
    %65 = vector.shape_cast %64 : vector<256xf32> to vector<1x256xf32>
    %66 = arith.mulf %60, %60 : vector<1x256xf32>
    %67 = arith.mulf %65, %65 : vector<1x256xf32>
    %68 = arith.addf %66, %67 : vector<1x256xf32>
    %c1_36 = arith.constant 1 : index
    %c0_37 = arith.constant 0 : index
    %c0_38 = arith.constant 0 : index
    %69 = vector.load %arg3[%c1_36, %c0_37, %c0_38] : memref<2x64x256xf32, #tpu.memory_space<vmem>>, vector<1x64x256xf32>
    %70 = vector.shape_cast %69 : vector<1x64x256xf32> to vector<64x256xf32>
    %c1_39 = arith.constant 1 : index
    %c0_40 = arith.constant 0 : index
    %c0_41 = arith.constant 0 : index
    %71 = vector.load %arg4[%c1_39, %c0_40, %c0_41] : memref<2x64x256xf32, #tpu.memory_space<vmem>>, vector<1x64x256xf32>
    %72 = vector.shape_cast %71 : vector<1x64x256xf32> to vector<64x256xf32>
    %73 = arith.mulf %49, %70 : vector<64x256xf32>
    %74 = arith.mulf %51, %72 : vector<64x256xf32>
    %75 = arith.subf %73, %74 : vector<64x256xf32>
    %cst_42 = arith.constant dense<0.000000e+00> : vector<256xf32>
    %76 = vector.multi_reduction <add>, %75, %cst_42 [0] : vector<64x256xf32> to vector<256xf32>
    %77 = vector.shape_cast %76 : vector<256xf32> to vector<1x256xf32>
    %78 = arith.mulf %49, %72 : vector<64x256xf32>
    %79 = arith.mulf %51, %70 : vector<64x256xf32>
    %80 = arith.addf %78, %79 : vector<64x256xf32>
    %cst_43 = arith.constant dense<0.000000e+00> : vector<256xf32>
    %81 = vector.multi_reduction <add>, %80, %cst_43 [0] : vector<64x256xf32> to vector<256xf32>
    %82 = vector.shape_cast %81 : vector<256xf32> to vector<1x256xf32>
    %83 = arith.mulf %77, %77 : vector<1x256xf32>
    %84 = arith.mulf %82, %82 : vector<1x256xf32>
    %85 = arith.addf %83, %84 : vector<1x256xf32>
    %86 = arith.addf %68, %85 : vector<1x256xf32>
    %87 = arith.subf %86, %85 : vector<1x256xf32>
    %cst_44 = arith.constant 2.000000e-01 : f32
    %88 = vector.broadcast %cst_44 : f32 to vector<1x256xf32>
    %89 = arith.addf %88, %87 : vector<1x256xf32>
    %90 = arith.divf %85, %89 : vector<1x256xf32>
    %cst_45 = arith.constant 1.000000e+00 : f32
    %91 = vector.broadcast %cst_45 : f32 to vector<1x256xf32>
    %92 = arith.addf %91, %90 : vector<1x256xf32>
    %93 = math.log %92 : vector<1x256xf32>
    %cst_46 = arith.constant 1.44269502 : f32
    %94 = vector.broadcast %cst_46 : f32 to vector<1x256xf32>
    %95 = arith.mulf %93, %94 : vector<1x256xf32>
    %96 = arith.addf %47, %95 : vector<1x256xf32>
    %c0_47 = arith.constant 0 : index
    %c0_48 = arith.constant 0 : index
    %97 = vector.load %arg5[%c0_47, %c0_48] : memref<1x256xf32, #tpu.memory_space<vmem>>, vector<1x256xf32>
    tpu.vector_store %arg5[%c0_47, %c0_48], %96 {strides = array<i32>} : memref<1x256xf32, #tpu.memory_space<vmem>>, vector<1x256xf32>,
    return
  }
  func.func @transform_0(%arg0: i32) -> (i32, i32, i32) {
    %c0_i32 = arith.constant 0 : i32
    %c0_i32_0 = arith.constant 0 : i32
    %c0_i32_1 = arith.constant 0 : i32
    return %c0_i32, %c0_i32_0, %arg0 : i32, i32, i32
  }
  func.func @transform_1(%arg0: i32) -> (i32, i32, i32) {
    %c0_i32 = arith.constant 0 : i32
    %c0_i32_0 = arith.constant 0 : i32
    %c0_i32_1 = arith.constant 0 : i32
    return %c0_i32, %c0_i32_0, %arg0 : i32, i32, i32
  }
  func.func @transform_2(%arg0: i32) -> (i32, i32, i32) {
    %c0_i32 = arith.constant 0 : i32
    %c0_i32_0 = arith.constant 0 : i32
    %c0_i32_1 = arith.constant 0 : i32
    return %c0_i32, %c0_i32_0, %arg0 : i32, i32, i32
  }
  func.func @transform_3(%arg0: i32) -> (i32, i32, i32) {
    %c0_i32 = arith.constant 0 : i32
    %c0_i32_0 = arith.constant 0 : i32
    %c0_i32_1 = arith.constant 0 : i32
    return %c0_i32, %c0_i32_0, %arg0 : i32, i32, i32
  }
  func.func @transform_4(%arg0: i32) -> (i32, i32) {
    %c0_i32 = arith.constant 0 : i32
    %c0_i32_0 = arith.constant 0 : i32
    return %c0_i32, %arg0 : i32, i32
  }
}

</mosaic_0001>

<llo_original>
// kernel: tpu_custom_call.1
$region0: #{tpu_custom_call.1}
  #allocation0 [shape = 'u32[]', space=smem, size = 0x4, offset = 0x4, fixed_abs, tag = 'smem constant byte address 0x4 - core index']
  #allocation1 [shape = 'u32[144,128]{1,0:T(1,128)}', space=vmem, size = 0x12000, scoped, tag = 'internal scratch']
  %s0 = inlined_call_operand.hbm [shape: f32[2,64,512], index: 0, kind: input, shape index: {}]
  %s1 = inlined_call_operand.hbm [shape: f32[2,64,512], index: 1, kind: input, shape index: {}]
  %s2 = inlined_call_operand.hbm [shape: f32[2,64,512], index: 2, kind: input, shape index: {}]
  %s3 = inlined_call_operand.hbm [shape: f32[2,64,512], index: 3, kind: input, shape index: {}]
  %s4 = inlined_call_operand.hbm [shape: f32[1,512], index: 4, kind: output, shape index: {}]
  %s5 = sld [smem:[#allocation0]]
  $region65: #{tpu_custom_call.1} parent=0
    _
  %s7 = ssub.s32 1, %s5
  %s8 = scalar_select 0, %s7, %s5
  $region1: #{tpu_custom_call.1} parent=0
    #allocation2 [shape = 'u8[262144]{0}', space=vmem, size = 0x40000, scoped, tag = 'input window, operand 0']
    #allocation3 [shape = 's32[2]{0}', space=sflag, size = 0x8, scoped, tag = 'scoped memory for tpu_custom_call.1']
    #allocation4 [shape = 's32[2]{0}', space=sflag, size = 0x8, scoped, tag = 'scoped memory for tpu_custom_call.1']
    #allocation5 [shape = 'u8[262144]{0}', space=vmem, size = 0x40000, scoped, tag = 'input window, operand 1']
    #allocation6 [shape = 's32[2]{0}', space=sflag, size = 0x8, scoped, tag = 'scoped memory for tpu_custom_call.1']
    #allocation7 [shape = 'u8[262144]{0}', space=vmem, size = 0x40000, scoped, tag = 'input window, operand 2']
    #allocation8 [shape = 'u8[262144]{0}', space=vmem, size = 0x40000, scoped, tag = 'input window, operand 3']
    #allocation9 [shape = 's32[2]{0}', space=sflag, size = 0x8, scoped, tag = 'scoped memory for tpu_custom_call.1']
    #allocation10 [shape = 'u8[2048]{0}', space=vmem, size = 0x800, scoped, tag = 'output window, operand 0']
    %9 = vsyncpa [#allocation3], 0
    %s10 = scalar_lea.sflag [#allocation3], 1
    %11 = vsyncpa %s10, 0
    %12 = vsyncpa [#allocation6], 0
    %s13 = scalar_lea.sflag [#allocation6], 1
    %14 = vsyncpa %s13, 0
    %15 = vsyncpa [#allocation9], 0
    %s16 = scalar_lea.sflag [#allocation9], 1
    %17 = vsyncpa %s16, 0
    %18 = vsyncpa [#allocation4], 0
    %s19 = scalar_lea.sflag [#allocation4], 1
    %20 = vsyncpa %s19, 0
    loop: start=0, step=1, limit=4
    $region2: #{tpu_custom_call.1} parent=1 // loop_pre_header
      _
    $region3: #{tpu_custom_call.1} parent=1 // loop_header
      %s22 = sphi 0, %s26
      %p23 = scmp.ge.s32.totalorder %s22, 4
      %s32 = sphi 0, %s34
      %s35 = sphi 0, %s32
      %s36 = sphi 0, %s35
      %s52 = sphi 0, %s36
      %s58 = sphi 0, %s60
      %s61 = sphi 0, %s58
      %s62 = sphi 0, %s61
      %s78 = sphi 0, %s62
      %s84 = sphi 0, %s86
      %s87 = sphi 0, %s84
      %s88 = sphi 0, %s87
      %s104 = sphi 0, %s88
      %s110 = sphi 0, %s112
      %s113 = sphi 0, %s110
      %s114 = sphi 0, %s113
      %s130 = sphi 0, %s114
      %s136 = sphi 0, %s138
      %s139 = sphi 0, %s136
      %s140 = sphi 0, %s139
      %s156 = sphi 0, %s140
    $region4: #{tpu_custom_call.1} parent=1 // loop_header_branch
      %25 = sbr.rel (%p23) target = $region8
    $region5: #{tpu_custom_call.1} parent=1 // loop_body
      %s27 = ssub.s32 %s22, 1
      %s28 = ssub.s32 %s22, 2
      %s29 = sadd.s32 %s22, 1
      %s30 = ssub.s32 %s22, %s29
      %p31 = scmp.eq.s32.totalorder %s30, 0
      %s33 = sadd.s32 %s32, 1
      %s34 = scalar_select %p31, %s32, %s33
      %p37 = pneg %p31
      %p38 = scmp.eq.s32.totalorder %s22, 1
      %p39 = por %p37, %p38
      %p40 = scmp.ne.s32.totalorder %s32, %s35
      %p41 = scmp.eq.s32.totalorder %s22, 0
      %p42 = por %p40, %p41
      %p43 = scmp.ne.s32.totalorder %s32, %s35
      %p44 = scmp.eq.s32.totalorder %s27, 1
      %p45 = por %p43, %p44
      %p46 = scmp.ne.s32.totalorder %s35, %s36
      %p47 = scmp.eq.s32.totalorder %s27, 0
      %p48 = por %p46, %p47
      %p49 = scmp.ne.s32.totalorder %s35, %s36
      %p50 = scmp.eq.s32.totalorder %s28, 1
      %p51 = por %p49, %p50
      %p53 = scmp.ne.s32.totalorder %s36, %s52
      %p54 = scmp.eq.s32.totalorder %s28, 0
      %p55 = por %p53, %p54
      %s56 = ssub.s32 %s22, %s29
      %p57 = scmp.eq.s32.totalorder %s56, 0
      %s59 = sadd.s32 %s58, 1
      %s60 = scalar_select %p57, %s58, %s59
      %p63 = pneg %p57
      %p64 = scmp.eq.s32.totalorder %s22, 1
      %p65 = por %p63, %p64
      %p66 = scmp.ne.s32.totalorder %s58, %s61
      %p67 = scmp.eq.s32.totalorder %s22, 0
      %p68 = por %p66, %p67
      %p69 = scmp.ne.s32.totalorder %s58, %s61
      %p70 = scmp.eq.s32.totalorder %s27, 1
      %p71 = por %p69, %p70
      %p72 = scmp.ne.s32.totalorder %s61, %s62
      %p73 = scmp.eq.s32.totalorder %s27, 0
      %p74 = por %p72, %p73
      %p75 = scmp.ne.s32.totalorder %s61, %s62
      %p76 = scmp.eq.s32.totalorder %s28, 1
      %p77 = por %p75, %p76
      %p79 = scmp.ne.s32.totalorder %s62, %s78
      %p80 = scmp.eq.s32.totalorder %s28, 0
      %p81 = por %p79, %p80
      %s82 = ssub.s32 %s22, %s29
      %p83 = scmp.eq.s32.totalorder %s82, 0
      %s85 = sadd.s32 %s84, 1
      %s86 = scalar_select %p83, %s84, %s85
      %p89 = pneg %p83
      %p90 = scmp.eq.s32.totalorder %s22, 1
      %p91 = por %p89, %p90
      %p92 = scmp.ne.s32.totalorder %s84, %s87
      %p93 = scmp.eq.s32.totalorder %s22, 0
      %p94 = por %p92, %p93
      %p95 = scmp.ne.s32.totalorder %s84, %s87
      %p96 = scmp.eq.s32.totalorder %s27, 1
      %p97 = por %p95, %p96
      %p98 = scmp.ne.s32.totalorder %s87, %s88
      %p99 = scmp.eq.s32.totalorder %s27, 0
      %p100 = por %p98, %p99
      %p101 = scmp.ne.s32.totalorder %s87, %s88
      %p102 = scmp.eq.s32.totalorder %s28, 1
      %p103 = por %p101, %p102
      %p105 = scmp.ne.s32.totalorder %s88, %s104
      %p106 = scmp.eq.s32.totalorder %s28, 0
      %p107 = por %p105, %p106
      %s108 = ssub.s32 %s22, %s29
      %p109 = scmp.eq.s32.totalorder %s108, 0
      %s111 = sadd.s32 %s110, 1
      %s112 = scalar_select %p109, %s110, %s111
      %p115 = pneg %p109
      %p116 = scmp.eq.s32.totalorder %s22, 1
      %p117 = por %p115, %p116
      %p118 = scmp.ne.s32.totalorder %s110, %s113
      %p119 = scmp.eq.s32.totalorder %s22, 0
      %p120 = por %p118, %p119
      %p121 = scmp.ne.s32.totalorder %s110, %s113
      %p122 = scmp.eq.s32.totalorder %s27, 1
      %p123 = por %p121, %p122
      %p124 = scmp.ne.s32.totalorder %s113, %s114
      %p125 = scmp.eq.s32.totalorder %s27, 0
      %p126 = por %p124, %p125
      %p127 = scmp.ne.s32.totalorder %s113, %s114
      %p128 = scmp.eq.s32.totalorder %s28, 1
      %p129 = por %p127, %p128
      %p131 = scmp.ne.s32.totalorder %s114, %s130
      %p132 = scmp.eq.s32.totalorder %s28, 0
      %p133 = por %p131, %p132
      %s134 = ssub.s32 %s22, %s29
      %p135 = scmp.eq.s32.totalorder %s134, 0
      %s137 = sadd.s32 %s136, 1
      %s138 = scalar_select %p135, %s136, %s137
      %p141 = pneg %p135
      %p142 = scmp.eq.s32.totalorder %s22, 1
      %p143 = por %p141, %p142
      %p144 = scmp.ne.s32.totalorder %s136, %s139
      %p145 = scmp.eq.s32.totalorder %s22, 0
      %p146 = por %p144, %p145
      %p147 = scmp.ne.s32.totalorder %s136, %s139
      %p148 = scmp.eq.s32.totalorder %s27, 1
      %p149 = por %p147, %p148
      %p150 = scmp.ne.s32.totalorder %s139, %s140
      %p151 = scmp.eq.s32.totalorder %s27, 0
      %p152 = por %p150, %p151
      %p153 = scmp.ne.s32.totalorder %s139, %s140
      %p154 = scmp.eq.s32.totalorder %s28, 1
      %p155 = por %p153, %p154
      %p157 = scmp.ne.s32.totalorder %s140, %s156
      %p158 = scmp.eq.s32.totalorder %s28, 0
      %p159 = por %p157, %p158
      %p160 = scmp.le.s32.totalorder 1, %s22
      %p161 = scmp.lt.s32.totalorder %s22, 3
      %p162 = pnand %p160, %p161
      %p163 = pneg %p162
      // Predicated region
      $region9: #{tpu_custom_call.1} parent=5 // pred_check
        _
      $region10: #{tpu_custom_call.1} parent=5 // pred_check_branch
        %165 = sbr.rel (%p162) target = $region12
      $region11: #{tpu_custom_call.1} parent=5 // pred_region
        %s166 = ssub.s32 %s22, 1
      $region12: #{tpu_custom_call.1} parent=5 // pred_fallthru
        _
      %p167 = scmp.lt.s32.totalorder %s22, 2
      // Predicated region
      $region13: #{tpu_custom_call.1} parent=5 // pred_check
        %p168 = pneg %p167
      $region14: #{tpu_custom_call.1} parent=5 // pred_check_branch
        %170 = sbr.rel (%p168) target = $region16
      $region15: #{tpu_custom_call.1} parent=5 // pred_region
        // Predicated region
        $region17: #{tpu_custom_call.1} parent=15 // pred_check
          %p171 = pneg %p42
        $region18: #{tpu_custom_call.1} parent=15 // pred_check_branch
          %173 = sbr.rel (%p171) target = $region20
        $region19: #{tpu_custom_call.1} parent=15 // pred_region
          %s174 = sand.u32 %s32, 1
          %s175 = scalar_lea.sflag [#allocation3], %s174
          %s176 = sand.u32 %s32, 1
          %s177 = smul.addr %s176, 256
          %s178 = scalar_lea.vmem [#allocation2], %s177
          %s179 = smul.u32 2, %s22
          %s181 = ssub.s32 4096, 4096
          %182 = vsyncadd %s175, %s181
          %s183 = smul.addr %s179, 128
          %s184 = scalar_lea.hbm %s0, %s183
          %s185 = sshll.u32 %s178, 4
          %s186 = int_to_ptr.vmem [resolvable:$true] %s185
          %191 = dma.hbm_to_vmem [thread:$0]  %s184, 4096, %s186, %s175, 512, 256, 16
        $region20: #{tpu_custom_call.1} parent=15 // pred_fallthru
          _
        // Predicated region
        $region21: #{tpu_custom_call.1} parent=15 // pred_check
          %p192 = pneg %p68
        $region22: #{tpu_custom_call.1} parent=15 // pred_check_branch
          %194 = sbr.rel (%p192) target = $region24
        $region23: #{tpu_custom_call.1} parent=15 // pred_region
          %s195 = sand.u32 %s22, 1
          %s196 = scalar_lea.sflag [#allocation6], %s195
          %s197 = sand.u32 %s58, 1
          %s198 = smul.addr %s197, 256
          %s199 = scalar_lea.vmem [#allocation5], %s198
          %s200 = smul.u32 2, %s22
          %s202 = ssub.s32 4096, 4096
          %203 = vsyncadd %s196, %s202
          %s204 = smul.addr %s200, 128
          %s205 = scalar_lea.hbm %s1, %s204
          %s206 = sshll.u32 %s199, 4
          %s207 = int_to_ptr.vmem [resolvable:$true] %s206
          %212 = dma.hbm_to_vmem [thread:$0]  %s205, 4096, %s207, %s196, 512, 256, 16
        $region24: #{tpu_custom_call.1} parent=15 // pred_fallthru
          _
        // Predicated region
        $region25: #{tpu_custom_call.1} parent=15 // pred_check
          %p213 = pneg %p94
        $region26: #{tpu_custom_call.1} parent=15 // pred_check_branch
          %215 = sbr.rel (%p213) target = $region28
        $region27: #{tpu_custom_call.1} parent=15 // pred_region
          %s216 = sand.u32 %s22, 1
          %s217 = scalar_lea.sflag [#allocation6], %s216
          %s218 = sand.u32 %s84, 1
          %s219 = smul.addr %s218, 256
          %s220 = scalar_lea.vmem [#allocation7], %s219
          %s221 = smul.u32 2, %s22
          %s223 = ssub.s32 4096, 4096
          %224 = vsyncadd %s217, %s223
          %s225 = smul.addr %s221, 128
          %s226 = scalar_lea.hbm %s2, %s225
          %s227 = sshll.u32 %s220, 4
          %s228 = int_to_ptr.vmem [resolvable:$true] %s227
          %233 = dma.hbm_to_vmem [thread:$0]  %s226, 4096, %s228, %s217, 512, 256, 16
        $region28: #{tpu_custom_call.1} parent=15 // pred_fallthru
          _
        // Predicated region
        $region29: #{tpu_custom_call.1} parent=15 // pred_check
          %p234 = pneg %p120
        $region30: #{tpu_custom_call.1} parent=15 // pred_check_branch
          %236 = sbr.rel (%p234) target = $region32
        $region31: #{tpu_custom_call.1} parent=15 // pred_region
          %s237 = sand.u32 %s110, 1
          %s238 = scalar_lea.sflag [#allocation9], %s237
          %s239 = sand.u32 %s110, 1
          %s240 = smul.addr %s239, 256
          %s241 = scalar_lea.vmem [#allocation8], %s240
          %s242 = smul.u32 2, %s22
          %s244 = ssub.s32 4096, 4096
          %245 = vsyncadd %s238, %s244
          %s246 = smul.addr %s242, 128
          %s247 = scalar_lea.hbm %s3, %s246
          %s248 = sshll.u32 %s241, 4
          %s249 = int_to_ptr.vmem [resolvable:$true] %s248
          %254 = dma.hbm_to_vmem [thread:$0]  %s247, 4096, %s249, %s238, 512, 256, 16
        $region32: #{tpu_custom_call.1} parent=15 // pred_fallthru
          _
      $region16: #{tpu_custom_call.1} parent=5 // pred_fallthru
        _
      %p255 = scmp.le.s32.totalorder 1, %s22
      %p256 = scmp.lt.s32.totalorder %s22, 3
      %p257 = pnand %p255, %p256
      %p258 = pneg %p257
      // Predicated region
      $region33: #{tpu_custom_call.1} parent=5 // pred_check
        _
      $region34: #{tpu_custom_call.1} parent=5 // pred_check_branch
        %260 = sbr.rel (%p257) target = $region36
      $region35: #{tpu_custom_call.1} parent=5 // pred_region
        %s261 = ssub.s32 %s22, 1
        %s262 = sand.u32 %s35, 1
        %s263 = scalar_lea.sflag [#allocation3], %s262
        %s264 = sand.u32 %s35, 1
        %s265 = smul.addr %s264, 256
        %s266 = scalar_lea.vmem [#allocation2], %s265
        // Predicated region
        $region37: #{tpu_custom_call.1} parent=35 // pred_check
          %p267 = pneg %p48
        $region38: #{tpu_custom_call.1} parent=35 // pred_check_branch
          %269 = sbr.rel (%p267) target = $region40
        $region39: #{tpu_custom_call.1} parent=35 // pred_region
          %270 = dma.done %s263, 4096
        $region40: #{tpu_custom_call.1} parent=35 // pred_fallthru
          _
        %s271 = sand.u32 %s27, 1
        %s272 = scalar_lea.sflag [#allocation6], %s271
        %s273 = sand.u32 %s61, 1
        %s274 = smul.addr %s273, 256
        %s275 = scalar_lea.vmem [#allocation5], %s274
        // Predicated region
        $region41: #{tpu_custom_call.1} parent=35 // pred_check
          %p276 = pneg %p74
        $region42: #{tpu_custom_call.1} parent=35 // pred_check_branch
          %278 = sbr.rel (%p276) target = $region44
        $region43: #{tpu_custom_call.1} parent=35 // pred_region
          %279 = dma.done %s272, 4096
        $region44: #{tpu_custom_call.1} parent=35 // pred_fallthru
          _
        %s280 = sand.u32 %s27, 1
        %s281 = scalar_lea.sflag [#allocation6], %s280
        %s282 = sand.u32 %s87, 1
        %s283 = smul.addr %s282, 256
        %s284 = scalar_lea.vmem [#allocation7], %s283
        // Predicated region
        $region45: #{tpu_custom_call.1} parent=35 // pred_check
          %p285 = pneg %p100
        $region46: #{tpu_custom_call.1} parent=35 // pred_check_branch
          %287 = sbr.rel (%p285) target = $region48
        $region47: #{tpu_custom_call.1} parent=35 // pred_region
          %288 = dma.done %s281, 4096
        $region48: #{tpu_custom_call.1} parent=35 // pred_fallthru
          _
        %s289 = sand.u32 %s113, 1
        %s290 = scalar_lea.sflag [#allocation9], %s289
        %s291 = sand.u32 %s113, 1
        %s292 = smul.addr %s291, 256
        %s293 = scalar_lea.vmem [#allocation8], %s292
        // Predicated region
        $region49: #{tpu_custom_call.1} parent=35 // pred_check
          %p294 = pneg %p126
        $region50: #{tpu_custom_call.1} parent=35 // pred_check_branch
          %296 = sbr.rel (%p294) target = $region52
        $region51: #{tpu_custom_call.1} parent=35 // pred_region
          %297 = dma.done %s290, 4096
        $region52: #{tpu_custom_call.1} parent=35 // pred_fallthru
          _
        %s298 = sand.u32 %s35, 1
        %s299 = scalar_lea.sflag [#allocation3], %s298
        %s300 = sand.u32 %s35, 1
        %s301 = smul.addr %s300, 256
        %s302 = scalar_lea.vmem [#allocation2], %s301
        %p303 = pneg %p48
        %p304 = pneg %p45
        %s305 = sand.u32 %s27, 1
        %s306 = scalar_lea.sflag [#allocation6], %s305
        %s307 = sand.u32 %s61, 1
        %s308 = smul.addr %s307, 256
        %s309 = scalar_lea.vmem [#allocation5], %s308
        %p310 = pneg %p74
        %p311 = pneg %p71
        %s312 = sand.u32 %s27, 1
        %s313 = scalar_lea.sflag [#allocation6], %s312
        %s314 = sand.u32 %s87, 1
        %s315 = smul.addr %s314, 256
        %s316 = scalar_lea.vmem [#allocation7], %s315
        %p317 = pneg %p100
        %p318 = pneg %p97
        %s319 = sand.u32 %s113, 1
        %s320 = scalar_lea.sflag [#allocation9], %s319
        %s321 = sand.u32 %s113, 1
        %s322 = smul.addr %s321, 256
        %s323 = scalar_lea.vmem [#allocation8], %s322
        %p324 = pneg %p126
        %p325 = pneg %p123
        %p326 = pneg %p152
        %p327 = pneg %p149
        %s328 = sand.u32 %s139, 1
        %s329 = scalar_lea.sflag [#allocation4], %s328
        %s330 = sand.u32 %s139, 1
        %s331 = smul.addr %s330, 2
        %s332 = scalar_lea.vmem [#allocation10], %s331
        %s333 = smul.u32 2, %s27
        %s334 = smul.u32 2, %s27
        %s335 = smul.u32 2, %s27
        %s336 = smul.u32 2, %s27
        %s337 = smul.u32 2, %s27
        %v338 = vld [vmem:[%s266] sm:$0xff]
        %v339 = vld [vmem:[%s266 + $0x8] sm:$0xff]
        %v340 = vld [vmem:[%s266 + $0x10] sm:$0xff]
        %v341 = vld [vmem:[%s266 + $0x18] sm:$0xff]
        %v342 = vld [vmem:[%s266 + $0x20] sm:$0xff]
        %v343 = vld [vmem:[%s266 + $0x28] sm:$0xff]
        %v344 = vld [vmem:[%s266 + $0x30] sm:$0xff]
        %v345 = vld [vmem:[%s266 + $0x38] sm:$0xff]
        %v346 = vld [vmem:[%s266 + $0x40] sm:$0xff]
        %v347 = vld [vmem:[%s266 + $0x48] sm:$0xff]
        %v348 = vld [vmem:[%s266 + $0x50] sm:$0xff]
        %v349 = vld [vmem:[%s266 + $0x58] sm:$0xff]
        %v350 = vld [vmem:[%s266 + $0x60] sm:$0xff]
        %v351 = vld [vmem:[%s266 + $0x68] sm:$0xff]
        %v352 = vld [vmem:[%s266 + $0x70] sm:$0xff]
        %v353 = vld [vmem:[%s266 + $0x78] sm:$0xff]
        %v354 = vld [vmem:[%s275] sm:$0xff]
        %v355 = vld [vmem:[%s275 + $0x8] sm:$0xff]
        %v356 = vld [vmem:[%s275 + $0x10] sm:$0xff]
        %v357 = vld [vmem:[%s275 + $0x18] sm:$0xff]
        %v358 = vld [vmem:[%s275 + $0x20] sm:$0xff]
        %v359 = vld [vmem:[%s275 + $0x28] sm:$0xff]
        %v360 = vld [vmem:[%s275 + $0x30] sm:$0xff]
        %v361 = vld [vmem:[%s275 + $0x38] sm:$0xff]
        %v362 = vld [vmem:[%s275 + $0x40] sm:$0xff]
        %v363 = vld [vmem:[%s275 + $0x48] sm:$0xff]
        %v364 = vld [vmem:[%s275 + $0x50] sm:$0xff]
        %v365 = vld [vmem:[%s275 + $0x58] sm:$0xff]
        %v366 = vld [vmem:[%s275 + $0x60] sm:$0xff]
        %v367 = vld [vmem:[%s275 + $0x68] sm:$0xff]
        %v368 = vld [vmem:[%s275 + $0x70] sm:$0xff]
        %v369 = vld [vmem:[%s275 + $0x78] sm:$0xff]
        %v370 = vld [vmem:[%s284] sm:$0xff]
        %v371 = vld [vmem:[%s284 + $0x8] sm:$0xff]
        %v372 = vld [vmem:[%s284 + $0x10] sm:$0xff]
        %v373 = vld [vmem:[%s284 + $0x18] sm:$0xff]
        %v374 = vld [vmem:[%s284 + $0x20] sm:$0xff]
        %v375 = vld [vmem:[%s284 + $0x28] sm:$0xff]
        %v376 = vld [vmem:[%s284 + $0x30] sm:$0xff]
        %v377 = vld [vmem:[%s284 + $0x38] sm:$0xff]
        %v378 = vld [vmem:[%s284 + $0x40] sm:$0xff]
        %v379 = vld [vmem:[%s284 + $0x48] sm:$0xff]
        %v380 = vld [vmem:[%s284 + $0x50] sm:$0xff]
        %v381 = vld [vmem:[%s284 + $0x58] sm:$0xff]
        %v382 = vld [vmem:[%s284 + $0x60] sm:$0xff]
        %v383 = vld [vmem:[%s284 + $0x68] sm:$0xff]
        %v384 = vld [vmem:[%s284 + $0x70] sm:$0xff]
        %v385 = vld [vmem:[%s284 + $0x78] sm:$0xff]
        %v386 = vld [vmem:[%s293] sm:$0xff]
        %v387 = vld [vmem:[%s293 + $0x8] sm:$0xff]
        %v388 = vld [vmem:[%s293 + $0x10] sm:$0xff]
        %v389 = vld [vmem:[%s293 + $0x18] sm:$0xff]
        %v390 = vld [vmem:[%s293 + $0x20] sm:$0xff]
        %v391 = vld [vmem:[%s293 + $0x28] sm:$0xff]
        %v392 = vld [vmem:[%s293 + $0x30] sm:$0xff]
        %v393 = vld [vmem:[%s293 + $0x38] sm:$0xff]
        %v394 = vld [vmem:[%s293 + $0x40] sm:$0xff]
        %v395 = vld [vmem:[%s293 + $0x48] sm:$0xff]
        %v396 = vld [vmem:[%s293 + $0x50] sm:$0xff]
        %v397 = vld [vmem:[%s293 + $0x58] sm:$0xff]
        %v398 = vld [vmem:[%s293 + $0x60] sm:$0xff]
        %v399 = vld [vmem:[%s293 + $0x68] sm:$0xff]
        %v400 = vld [vmem:[%s293 + $0x70] sm:$0xff]
        %v401 = vld [vmem:[%s293 + $0x78] sm:$0xff]
        %v402 = vmul.f32 %v338, %v370
        %v403 = vmul.f32 %v339, %v371
        %v404 = vmul.f32 %v340, %v372
        %v405 = vmul.f32 %v341, %v373
        %v406 = vmul.f32 %v342, %v374
        %v407 = vmul.f32 %v343, %v375
        %v408 = vmul.f32 %v344, %v376
        %v409 = vmul.f32 %v345, %v377
        %v410 = vmul.f32 %v346, %v378
        %v411 = vmul.f32 %v347, %v379
        %v412 = vmul.f32 %v348, %v380
        %v413 = vmul.f32 %v349, %v381
        %v414 = vmul.f32 %v350, %v382
        %v415 = vmul.f32 %v351, %v383
        %v416 = vmul.f32 %v352, %v384
        %v417 = vmul.f32 %v353, %v385
        %v418 = vmul.f32 %v354, %v386
        %v419 = vmul.f32 %v355, %v387
        %v420 = vmul.f32 %v356, %v388
        %v421 = vmul.f32 %v357, %v389
        %v422 = vmul.f32 %v358, %v390
        %v423 = vmul.f32 %v359, %v391
        %v424 = vmul.f32 %v360, %v392
        %v425 = vmul.f32 %v361, %v393
        %v426 = vmul.f32 %v362, %v394
        %v427 = vmul.f32 %v363, %v395
        %v428 = vmul.f32 %v364, %v396
        %v429 = vmul.f32 %v365, %v397
        %v430 = vmul.f32 %v366, %v398
        %v431 = vmul.f32 %v367, %v399
        %v432 = vmul.f32 %v368, %v400
        %v433 = vmul.f32 %v369, %v401
        %v434 = vsub.f32 %v402, %v418
        %v435 = vsub.f32 %v403, %v419
        %v436 = vsub.f32 %v404, %v420
        %v437 = vsub.f32 %v405, %v421
        %v438 = vsub.f32 %v406, %v422
        %v439 = vsub.f32 %v407, %v423
        %v440 = vsub.f32 %v408, %v424
        %v441 = vsub.f32 %v409, %v425
        %v442 = vsub.f32 %v410, %v426
        %v443 = vsub.f32 %v411, %v427
        %v444 = vsub.f32 %v412, %v428
        %v445 = vsub.f32 %v413, %v429
        %v446 = vsub.f32 %v414, %v430
        %v447 = vsub.f32 %v415, %v431
        %v448 = vsub.f32 %v416, %v432
        %v449 = vsub.f32 %v417, %v433
        %v450 = vadd.f32 %v434, %v436
        %v451 = vadd.f32 %v450, %v438
        %v452 = vadd.f32 %v451, %v440
        %v453 = vadd.f32 %v452, %v442
        %v454 = vadd.f32 %v453, %v444
        %v455 = vadd.f32 %v454, %v446
        %v456 = vadd.f32 %v455, %v448
        %v457 = vrot.slane %v456, 4
        %v458 = vadd.f32 %v456, %v457
        %v459 = vrot.slane %v458, 2
        %v460 = vadd.f32 %v458, %v459
        %v461 = vrot.slane %v460, 1
        %v462 = vadd.f32 %v460, %v461
        %v463 = vadd.f32 %v435, %v437
        %v464 = vadd.f32 %v463, %v439
        %v465 = vadd.f32 %v464, %v441
        %v466 = vadd.f32 %v465, %v443
        %v467 = vadd.f32 %v466, %v445
        %v468 = vadd.f32 %v467, %v447
        %v469 = vadd.f32 %v468, %v449
        %v470 = vrot.slane %v469, 4
        %v471 = vadd.f32 %v469, %v470
        %v472 = vrot.slane %v471, 2
        %v473 = vadd.f32 %v471, %v472
        %v474 = vrot.slane %v473, 1
        %v475 = vadd.f32 %v473, %v474
        %v476 = vmul.f32 %v338, %v386
        %v477 = vmul.f32 %v339, %v387
        %v478 = vmul.f32 %v340, %v388
        %v479 = vmul.f32 %v341, %v389
        %v480 = vmul.f32 %v342, %v390
        %v481 = vmul.f32 %v343, %v391
        %v482 = vmul.f32 %v344, %v392
        %v483 = vmul.f32 %v345, %v393
        %v484 = vmul.f32 %v346, %v394
        %v485 = vmul.f32 %v347, %v395
        %v486 = vmul.f32 %v348, %v396
        %v487 = vmul.f32 %v349, %v397
        %v488 = vmul.f32 %v350, %v398
        %v489 = vmul.f32 %v351, %v399
        %v490 = vmul.f32 %v352, %v400
        %v491 = vmul.f32 %v353, %v401
        %v492 = vmul.f32 %v354, %v370
        %v493 = vmul.f32 %v355, %v371
        %v494 = vmul.f32 %v356, %v372
        %v495 = vmul.f32 %v357, %v373
        %v496 = vmul.f32 %v358, %v374
        %v497 = vmul.f32 %v359, %v375
        %v498 = vmul.f32 %v360, %v376
        %v499 = vmul.f32 %v361, %v377
        %v500 = vmul.f32 %v362, %v378
        %v501 = vmul.f32 %v363, %v379
        %v502 = vmul.f32 %v364, %v380
        %v503 = vmul.f32 %v365, %v381
        %v504 = vmul.f32 %v366, %v382
        %v505 = vmul.f32 %v367, %v383
        %v506 = vmul.f32 %v368, %v384
        %v507 = vmul.f32 %v369, %v385
        %v508 = vadd.f32 %v476, %v492
        %v509 = vadd.f32 %v477, %v493
        %v510 = vadd.f32 %v478, %v494
        %v511 = vadd.f32 %v479, %v495
        %v512 = vadd.f32 %v480, %v496
        %v513 = vadd.f32 %v481, %v497
        %v514 = vadd.f32 %v482, %v498
        %v515 = vadd.f32 %v483, %v499
        %v516 = vadd.f32 %v484, %v500
        %v517 = vadd.f32 %v485, %v501
        %v518 = vadd.f32 %v486, %v502
        %v519 = vadd.f32 %v487, %v503
        %v520 = vadd.f32 %v488, %v504
        %v521 = vadd.f32 %v489, %v505
        %v522 = vadd.f32 %v490, %v506
        %v523 = vadd.f32 %v491, %v507
        %v524 = vadd.f32 %v508, %v510
        %v525 = vadd.f32 %v524, %v512
        %v526 = vadd.f32 %v525, %v514
        %v527 = vadd.f32 %v526, %v516
        %v528 = vadd.f32 %v527, %v518
        %v529 = vadd.f32 %v528, %v520
        %v530 = vadd.f32 %v529, %v522
        %v531 = vrot.slane %v530, 4
        %v532 = vadd.f32 %v530, %v531
        %v533 = vrot.slane %v532, 2
        %v534 = vadd.f32 %v532, %v533
        %v535 = vrot.slane %v534, 1
        %v536 = vadd.f32 %v534, %v535
        %v537 = vadd.f32 %v509, %v511
        %v538 = vadd.f32 %v537, %v513
        %v539 = vadd.f32 %v538, %v515
        %v540 = vadd.f32 %v539, %v517
        %v541 = vadd.f32 %v540, %v519
        %v542 = vadd.f32 %v541, %v521
        %v543 = vadd.f32 %v542, %v523
        %v544 = vrot.slane %v543, 4
        %v545 = vadd.f32 %v543, %v544
        %v546 = vrot.slane %v545, 2
        %v547 = vadd.f32 %v545, %v546
        %v548 = vrot.slane %v547, 1
        %v549 = vadd.f32 %v547, %v548
        %v550 = vmul.f32 %v462, %v462
        %v551 = vmul.f32 %v475, %v475
        %v552 = vmul.f32 %v536, %v536
        %v553 = vmul.f32 %v549, %v549
        %v554 = vadd.f32 %v550, %v552
        %v555 = vadd.f32 %v551, %v553
        %s556 = scalar_lea.vmem %s284, 128 [#allocation7]
        %v557 = vld [vmem:[%s556] sm:$0xff]
        %v558 = vld [vmem:[%s556 + $0x8] sm:$0xff]
        %v559 = vld [vmem:[%s556 + $0x10] sm:$0xff]
        %v560 = vld [vmem:[%s556 + $0x18] sm:$0xff]
        %v561 = vld [vmem:[%s556 + $0x20] sm:$0xff]
        %v562 = vld [vmem:[%s556 + $0x28] sm:$0xff]
        %v563 = vld [vmem:[%s556 + $0x30] sm:$0xff]
        %v564 = vld [vmem:[%s556 + $0x38] sm:$0xff]
        %v565 = vld [vmem:[%s556 + $0x40] sm:$0xff]
        %v566 = vld [vmem:[%s556 + $0x48] sm:$0xff]
        %v567 = vld [vmem:[%s556 + $0x50] sm:$0xff]
        %v568 = vld [vmem:[%s556 + $0x58] sm:$0xff]
        %v569 = vld [vmem:[%s556 + $0x60] sm:$0xff]
        %v570 = vld [vmem:[%s556 + $0x68] sm:$0xff]
        %v571 = vld [vmem:[%s556 + $0x70] sm:$0xff]
        %v572 = vld [vmem:[%s556 + $0x78] sm:$0xff]
        %s573 = scalar_lea.vmem %s293, 128 [#allocation8]
        %v574 = vld [vmem:[%s573] sm:$0xff]
        %v575 = vld [vmem:[%s573 + $0x8] sm:$0xff]
        %v576 = vld [vmem:[%s573 + $0x10] sm:$0xff]
        %v577 = vld [vmem:[%s573 + $0x18] sm:$0xff]
        %v578 = vld [vmem:[%s573 + $0x20] sm:$0xff]
        %v579 = vld [vmem:[%s573 + $0x28] sm:$0xff]
        %v580 = vld [vmem:[%s573 + $0x30] sm:$0xff]
        %v581 = vld [vmem:[%s573 + $0x38] sm:$0xff]
        %v582 = vld [vmem:[%s573 + $0x40] sm:$0xff]
        %v583 = vld [vmem:[%s573 + $0x48] sm:$0xff]
        %v584 = vld [vmem:[%s573 + $0x50] sm:$0xff]
        %v585 = vld [vmem:[%s573 + $0x58] sm:$0xff]
        %v586 = vld [vmem:[%s573 + $0x60] sm:$0xff]
        %v587 = vld [vmem:[%s573 + $0x68] sm:$0xff]
        %v588 = vld [vmem:[%s573 + $0x70] sm:$0xff]
        %v589 = vld [vmem:[%s573 + $0x78] sm:$0xff]
        %v590 = vmul.f32 %v338, %v557
        %v591 = vmul.f32 %v339, %v558
        %v592 = vmul.f32 %v340, %v559
        %v593 = vmul.f32 %v341, %v560
        %v594 = vmul.f32 %v342, %v561
        %v595 = vmul.f32 %v343, %v562
        %v596 = vmul.f32 %v344, %v563
        %v597 = vmul.f32 %v345, %v564
        %v598 = vmul.f32 %v346, %v565
        %v599 = vmul.f32 %v347, %v566
        %v600 = vmul.f32 %v348, %v567
        %v601 = vmul.f32 %v349, %v568
        %v602 = vmul.f32 %v350, %v569
        %v603 = vmul.f32 %v351, %v570
        %v604 = vmul.f32 %v352, %v571
        %v605 = vmul.f32 %v353, %v572
        %v606 = vmul.f32 %v354, %v574
        %v607 = vmul.f32 %v355, %v575
        %v608 = vmul.f32 %v356, %v576
        %v609 = vmul.f32 %v357, %v577
        %v610 = vmul.f32 %v358, %v578
        %v611 = vmul.f32 %v359, %v579
        %v612 = vmul.f32 %v360, %v580
        %v613 = vmul.f32 %v361, %v581
        %v614 = vmul.f32 %v362, %v582
        %v615 = vmul.f32 %v363, %v583
        %v616 = vmul.f32 %v364, %v584
        %v617 = vmul.f32 %v365, %v585
        %v618 = vmul.f32 %v366, %v586
        %v619 = vmul.f32 %v367, %v587
        %v620 = vmul.f32 %v368, %v588
        %v621 = vmul.f32 %v369, %v589
        %v622 = vsub.f32 %v590, %v606
        %v623 = vsub.f32 %v591, %v607
        %v624 = vsub.f32 %v592, %v608
        %v625 = vsub.f32 %v593, %v609
        %v626 = vsub.f32 %v594, %v610
        %v627 = vsub.f32 %v595, %v611
        %v628 = vsub.f32 %v596, %v612
        %v629 = vsub.f32 %v597, %v613
        %v630 = vsub.f32 %v598, %v614
        %v631 = vsub.f32 %v599, %v615
        %v632 = vsub.f32 %v600, %v616
        %v633 = vsub.f32 %v601, %v617
        %v634 = vsub.f32 %v602, %v618
        %v635 = vsub.f32 %v603, %v619
        %v636 = vsub.f32 %v604, %v620
        %v637 = vsub.f32 %v605, %v621
        %v638 = vadd.f32 %v622, %v624
        %v639 = vadd.f32 %v638, %v626
        %v640 = vadd.f32 %v639, %v628
        %v641 = vadd.f32 %v640, %v630
        %v642 = vadd.f32 %v641, %v632
        %v643 = vadd.f32 %v642, %v634
        %v644 = vadd.f32 %v643, %v636
        %v645 = vrot.slane %v644, 4
        %v646 = vadd.f32 %v644, %v645
        %v647 = vrot.slane %v646, 2
        %v648 = vadd.f32 %v646, %v647
        %v649 = vrot.slane %v648, 1
        %v650 = vadd.f32 %v648, %v649
        %v651 = vadd.f32 %v623, %v625
        %v652 = vadd.f32 %v651, %v627
        %v653 = vadd.f32 %v652, %v629
        %v654 = vadd.f32 %v653, %v631
        %v655 = vadd.f32 %v654, %v633
        %v656 = vadd.f32 %v655, %v635
        %v657 = vadd.f32 %v656, %v637
        %v658 = vrot.slane %v657, 4
        %v659 = vadd.f32 %v657, %v658
        %v660 = vrot.slane %v659, 2
        %v661 = vadd.f32 %v659, %v660
        %v662 = vrot.slane %v661, 1
        %v663 = vadd.f32 %v661, %v662
        %v664 = vmul.f32 %v338, %v574
        %v665 = vmul.f32 %v339, %v575
        %v666 = vmul.f32 %v340, %v576
        %v667 = vmul.f32 %v341, %v577
        %v668 = vmul.f32 %v342, %v578
        %v669 = vmul.f32 %v343, %v579
        %v670 = vmul.f32 %v344, %v580
        %v671 = vmul.f32 %v345, %v581
        %v672 = vmul.f32 %v346, %v582
        %v673 = vmul.f32 %v347, %v583
        %v674 = vmul.f32 %v348, %v584
        %v675 = vmul.f32 %v349, %v585
        %v676 = vmul.f32 %v350, %v586
        %v677 = vmul.f32 %v351, %v587
        %v678 = vmul.f32 %v352, %v588
        %v679 = vmul.f32 %v353, %v589
        %v680 = vmul.f32 %v354, %v557
        %v681 = vmul.f32 %v355, %v558
        %v682 = vmul.f32 %v356, %v559
        %v683 = vmul.f32 %v357, %v560
        %v684 = vmul.f32 %v358, %v561
        %v685 = vmul.f32 %v359, %v562
        %v686 = vmul.f32 %v360, %v563
        %v687 = vmul.f32 %v361, %v564
        %v688 = vmul.f32 %v362, %v565
        %v689 = vmul.f32 %v363, %v566
        %v690 = vmul.f32 %v364, %v567
        %v691 = vmul.f32 %v365, %v568
        %v692 = vmul.f32 %v366, %v569
        %v693 = vmul.f32 %v367, %v570
        %v694 = vmul.f32 %v368, %v571
        %v695 = vmul.f32 %v369, %v572
        %v696 = vadd.f32 %v664, %v680
        %v697 = vadd.f32 %v665, %v681
        %v698 = vadd.f32 %v666, %v682
        %v699 = vadd.f32 %v667, %v683
        %v700 = vadd.f32 %v668, %v684
        %v701 = vadd.f32 %v669, %v685
        %v702 = vadd.f32 %v670, %v686
        %v703 = vadd.f32 %v671, %v687
        %v704 = vadd.f32 %v672, %v688
        %v705 = vadd.f32 %v673, %v689
        %v706 = vadd.f32 %v674, %v690
        %v707 = vadd.f32 %v675, %v691
        %v708 = vadd.f32 %v676, %v692
        %v709 = vadd.f32 %v677, %v693
        %v710 = vadd.f32 %v678, %v694
        %v711 = vadd.f32 %v679, %v695
        %v712 = vadd.f32 %v696, %v698
        %v713 = vadd.f32 %v712, %v700
        %v714 = vadd.f32 %v713, %v702
        %v715 = vadd.f32 %v714, %v704
        %v716 = vadd.f32 %v715, %v706
        %v717 = vadd.f32 %v716, %v708
        %v718 = vadd.f32 %v717, %v710
        %v719 = vrot.slane %v718, 4
        %v720 = vadd.f32 %v718, %v719
        %v721 = vrot.slane %v720, 2
        %v722 = vadd.f32 %v720, %v721
        %v723 = vrot.slane %v722, 1
        %v724 = vadd.f32 %v722, %v723
        %v725 = vadd.f32 %v697, %v699
        %v726 = vadd.f32 %v725, %v701
        %v727 = vadd.f32 %v726, %v703
        %v728 = vadd.f32 %v727, %v705
        %v729 = vadd.f32 %v728, %v707
        %v730 = vadd.f32 %v729, %v709
        %v731 = vadd.f32 %v730, %v711
        %v732 = vrot.slane %v731, 4
        %v733 = vadd.f32 %v731, %v732
        %v734 = vrot.slane %v733, 2
        %v735 = vadd.f32 %v733, %v734
        %v736 = vrot.slane %v735, 1
        %v737 = vadd.f32 %v735, %v736
        %v738 = vmul.f32 %v650, %v650
        %v739 = vmul.f32 %v663, %v663
        %v740 = vmul.f32 %v724, %v724
        %v741 = vmul.f32 %v737, %v737
        %v742 = vadd.f32 %v738, %v740
        %v743 = vadd.f32 %v739, %v741
        %v744 = vadd.f32 %v554, %v742
        %v745 = vadd.f32 %v555, %v743
        %v746 = vsub.f32 %v744, %v554
        %v747 = vsub.f32 %v745, %v555
        %v748 = vadd.f32 %v746, 0.2
        %v749 = vadd.f32 %v747, 0.2
        %v750 = vrcp.pop %v748
        %v751 = vmul.f32 %v554, %v750
        %v752 = vrcp.pop %v749
        %v753 = vmul.f32 %v555, %v752
        %v754 = vadd.f32 %v751, 1.0
        %v755 = vadd.f32 %v753, 1.0
        %v756 = vlog2.pop %v754
        %v757 = vmul.f32 %v756, 0.6931472
        %v758 = vlog2.pop %v755
        %v759 = vmul.f32 %v758, 0.6931472
        %v760 = vmul.f32 %v757, 1.442695
        %v761 = vmul.f32 %v759, 1.442695
        %s762 = scalar_lea.vmem %s266, 128 [#allocation2]
        %v763 = vld [vmem:[%s762] sm:$0xff]
        %v764 = vld [vmem:[%s762 + $0x8] sm:$0xff]
        %v765 = vld [vmem:[%s762 + $0x10] sm:$0xff]
        %v766 = vld [vmem:[%s762 + $0x18] sm:$0xff]
        %v767 = vld [vmem:[%s762 + $0x20] sm:$0xff]
        %v768 = vld [vmem:[%s762 + $0x28] sm:$0xff]
        %v769 = vld [vmem:[%s762 + $0x30] sm:$0xff]
        %v770 = vld [vmem:[%s762 + $0x38] sm:$0xff]
        %v771 = vld [vmem:[%s762 + $0x40] sm:$0xff]
        %v772 = vld [vmem:[%s762 + $0x48] sm:$0xff]
        %v773 = vld [vmem:[%s762 + $0x50] sm:$0xff]
        %v774 = vld [vmem:[%s762 + $0x58] sm:$0xff]
        %v775 = vld [vmem:[%s762 + $0x60] sm:$0xff]
        %v776 = vld [vmem:[%s762 + $0x68] sm:$0xff]
        %v777 = vld [vmem:[%s762 + $0x70] sm:$0xff]
        %v778 = vld [vmem:[%s762 + $0x78] sm:$0xff]
        %s779 = scalar_lea.vmem %s275, 128 [#allocation5]
        %v780 = vld [vmem:[%s779] sm:$0xff]
        %v781 = vld [vmem:[%s779 + $0x8] sm:$0xff]
        %v782 = vld [vmem:[%s779 + $0x10] sm:$0xff]
        %v783 = vld [vmem:[%s779 + $0x18] sm:$0xff]
        %v784 = vld [vmem:[%s779 + $0x20] sm:$0xff]
        %v785 = vld [vmem:[%s779 + $0x28] sm:$0xff]
        %v786 = vld [vmem:[%s779 + $0x30] sm:$0xff]
        %v787 = vld [vmem:[%s779 + $0x38] sm:$0xff]
        %v788 = vld [vmem:[%s779 + $0x40] sm:$0xff]
        %v789 = vld [vmem:[%s779 + $0x48] sm:$0xff]
        %v790 = vld [vmem:[%s779 + $0x50] sm:$0xff]
        %v791 = vld [vmem:[%s779 + $0x58] sm:$0xff]
        %v792 = vld [vmem:[%s779 + $0x60] sm:$0xff]
        %v793 = vld [vmem:[%s779 + $0x68] sm:$0xff]
        %v794 = vld [vmem:[%s779 + $0x70] sm:$0xff]
        %v795 = vld [vmem:[%s779 + $0x78] sm:$0xff]
        %v796 = vmul.f32 %v763, %v370
        %v797 = vmul.f32 %v764, %v371
        %v798 = vmul.f32 %v765, %v372
        %v799 = vmul.f32 %v766, %v373
        %v800 = vmul.f32 %v767, %v374
        %v801 = vmul.f32 %v768, %v375
        %v802 = vmul.f32 %v769, %v376
        %v803 = vmul.f32 %v770, %v377
        %v804 = vmul.f32 %v771, %v378
        %v805 = vmul.f32 %v772, %v379
        %v806 = vmul.f32 %v773, %v380
        %v807 = vmul.f32 %v774, %v381
        %v808 = vmul.f32 %v775, %v382
        %v809 = vmul.f32 %v776, %v383
        %v810 = vmul.f32 %v777, %v384
        %v811 = vmul.f32 %v778, %v385
        %v812 = vmul.f32 %v780, %v386
        %v813 = vmul.f32 %v781, %v387
        %v814 = vmul.f32 %v782, %v388
        %v815 = vmul.f32 %v783, %v389
        %v816 = vmul.f32 %v784, %v390
        %v817 = vmul.f32 %v785, %v391
        %v818 = vmul.f32 %v786, %v392
        %v819 = vmul.f32 %v787, %v393
        %v820 = vmul.f32 %v788, %v394
        %v821 = vmul.f32 %v789, %v395
        %v822 = vmul.f32 %v790, %v396
        %v823 = vmul.f32 %v791, %v397
        %v824 = vmul.f32 %v792, %v398
        %v825 = vmul.f32 %v793, %v399
        %v826 = vmul.f32 %v794, %v400
        %v827 = vmul.f32 %v795, %v401
        %v828 = vsub.f32 %v796, %v812
        %v829 = vsub.f32 %v797, %v813
        %v830 = vsub.f32 %v798, %v814
        %v831 = vsub.f32 %v799, %v815
        %v832 = vsub.f32 %v800, %v816
        %v833 = vsub.f32 %v801, %v817
        %v834 = vsub.f32 %v802, %v818
        %v835 = vsub.f32 %v803, %v819
        %v836 = vsub.f32 %v804, %v820
        %v837 = vsub.f32 %v805, %v821
        %v838 = vsub.f32 %v806, %v822
        %v839 = vsub.f32 %v807, %v823
        %v840 = vsub.f32 %v808, %v824
        %v841 = vsub.f32 %v809, %v825
        %v842 = vsub.f32 %v810, %v826
        %v843 = vsub.f32 %v811, %v827
        %v844 = vadd.f32 %v828, %v830
        %v845 = vadd.f32 %v844, %v832
        %v846 = vadd.f32 %v845, %v834
        %v847 = vadd.f32 %v846, %v836
        %v848 = vadd.f32 %v847, %v838
        %v849 = vadd.f32 %v848, %v840
        %v850 = vadd.f32 %v849, %v842
        %v851 = vrot.slane %v850, 4
        %v852 = vadd.f32 %v850, %v851
        %v853 = vrot.slane %v852, 2
        %v854 = vadd.f32 %v852, %v853
        %v855 = vrot.slane %v854, 1
        %v856 = vadd.f32 %v854, %v855
        %v857 = vadd.f32 %v829, %v831
        %v858 = vadd.f32 %v857, %v833
        %v859 = vadd.f32 %v858, %v835
        %v860 = vadd.f32 %v859, %v837
        %v861 = vadd.f32 %v860, %v839
        %v862 = vadd.f32 %v861, %v841
        %v863 = vadd.f32 %v862, %v843
        %v864 = vrot.slane %v863, 4
        %v865 = vadd.f32 %v863, %v864
        %v866 = vrot.slane %v865, 2
        %v867 = vadd.f32 %v865, %v866
        %v868 = vrot.slane %v867, 1
        %v869 = vadd.f32 %v867, %v868
        %v870 = vmul.f32 %v763, %v386
        %v871 = vmul.f32 %v764, %v387
        %v872 = vmul.f32 %v765, %v388
        %v873 = vmul.f32 %v766, %v389
        %v874 = vmul.f32 %v767, %v390
        %v875 = vmul.f32 %v768, %v391
        %v876 = vmul.f32 %v769, %v392
        %v877 = vmul.f32 %v770, %v393
        %v878 = vmul.f32 %v771, %v394
        %v879 = vmul.f32 %v772, %v395
        %v880 = vmul.f32 %v773, %v396
        %v881 = vmul.f32 %v774, %v397
        %v882 = vmul.f32 %v775, %v398
        %v883 = vmul.f32 %v776, %v399
        %v884 = vmul.f32 %v777, %v400
        %v885 = vmul.f32 %v778, %v401
        %v886 = vmul.f32 %v780, %v370
        %v887 = vmul.f32 %v781, %v371
        %v888 = vmul.f32 %v782, %v372
        %v889 = vmul.f32 %v783, %v373
        %v890 = vmul.f32 %v784, %v374
        %v891 = vmul.f32 %v785, %v375
        %v892 = vmul.f32 %v786, %v376
        %v893 = vmul.f32 %v787, %v377
        %v894 = vmul.f32 %v788, %v378
        %v895 = vmul.f32 %v789, %v379
        %v896 = vmul.f32 %v790, %v380
        %v897 = vmul.f32 %v791, %v381
        %v898 = vmul.f32 %v792, %v382
        %v899 = vmul.f32 %v793, %v383
        %v900 = vmul.f32 %v794, %v384
        %v901 = vmul.f32 %v795, %v385
        %v902 = vadd.f32 %v870, %v886
        %v903 = vadd.f32 %v871, %v887
        %v904 = vadd.f32 %v872, %v888
        %v905 = vadd.f32 %v873, %v889
        %v906 = vadd.f32 %v874, %v890
        %v907 = vadd.f32 %v875, %v891
        %v908 = vadd.f32 %v876, %v892
        %v909 = vadd.f32 %v877, %v893
        %v910 = vadd.f32 %v878, %v894
        %v911 = vadd.f32 %v879, %v895
        %v912 = vadd.f32 %v880, %v896
        %v913 = vadd.f32 %v881, %v897
        %v914 = vadd.f32 %v882, %v898
        %v915 = vadd.f32 %v883, %v899
        %v916 = vadd.f32 %v884, %v900
        %v917 = vadd.f32 %v885, %v901
        %v918 = vadd.f32 %v902, %v904
        %v919 = vadd.f32 %v918, %v906
        %v920 = vadd.f32 %v919, %v908
        %v921 = vadd.f32 %v920, %v910
        %v922 = vadd.f32 %v921, %v912
        %v923 = vadd.f32 %v922, %v914
        %v924 = vadd.f32 %v923, %v916
        %v925 = vrot.slane %v924, 4
        %v926 = vadd.f32 %v924, %v925
        %v927 = vrot.slane %v926, 2
        %v928 = vadd.f32 %v926, %v927
        %v929 = vrot.slane %v928, 1
        %v930 = vadd.f32 %v928, %v929
        %v931 = vadd.f32 %v903, %v905
        %v932 = vadd.f32 %v931, %v907
        %v933 = vadd.f32 %v932, %v909
        %v934 = vadd.f32 %v933, %v911
        %v935 = vadd.f32 %v934, %v913
        %v936 = vadd.f32 %v935, %v915
        %v937 = vadd.f32 %v936, %v917
        %v938 = vrot.slane %v937, 4
        %v939 = vadd.f32 %v937, %v938
        %v940 = vrot.slane %v939, 2
        %v941 = vadd.f32 %v939, %v940
        %v942 = vrot.slane %v941, 1
        %v943 = vadd.f32 %v941, %v942
        %v944 = vmul.f32 %v856, %v856
        %v945 = vmul.f32 %v869, %v869
        %v946 = vmul.f32 %v930, %v930
        %v947 = vmul.f32 %v943, %v943
        %v948 = vadd.f32 %v944, %v946
        %v949 = vadd.f32 %v945, %v947
        %v950 = vmul.f32 %v763, %v557
        %v951 = vmul.f32 %v764, %v558
        %v952 = vmul.f32 %v765, %v559
        %v953 = vmul.f32 %v766, %v560
        %v954 = vmul.f32 %v767, %v561
        %v955 = vmul.f32 %v768, %v562
        %v956 = vmul.f32 %v769, %v563
        %v957 = vmul.f32 %v770, %v564
        %v958 = vmul.f32 %v771, %v565
        %v959 = vmul.f32 %v772, %v566
        %v960 = vmul.f32 %v773, %v567
        %v961 = vmul.f32 %v774, %v568
        %v962 = vmul.f32 %v775, %v569
        %v963 = vmul.f32 %v776, %v570
        %v964 = vmul.f32 %v777, %v571
        %v965 = vmul.f32 %v778, %v572
        %v966 = vmul.f32 %v780, %v574
        %v967 = vmul.f32 %v781, %v575
        %v968 = vmul.f32 %v782, %v576
        %v969 = vmul.f32 %v783, %v577
        %v970 = vmul.f32 %v784, %v578
        %v971 = vmul.f32 %v785, %v579
        %v972 = vmul.f32 %v786, %v580
        %v973 = vmul.f32 %v787, %v581
        %v974 = vmul.f32 %v788, %v582
        %v975 = vmul.f32 %v789, %v583
        %v976 = vmul.f32 %v790, %v584
        %v977 = vmul.f32 %v791, %v585
        %v978 = vmul.f32 %v792, %v586
        %v979 = vmul.f32 %v793, %v587
        %v980 = vmul.f32 %v794, %v588
        %v981 = vmul.f32 %v795, %v589
        %v982 = vsub.f32 %v950, %v966
        %v983 = vsub.f32 %v951, %v967
        %v984 = vsub.f32 %v952, %v968
        %v985 = vsub.f32 %v953, %v969
        %v986 = vsub.f32 %v954, %v970
        %v987 = vsub.f32 %v955, %v971
        %v988 = vsub.f32 %v956, %v972
        %v989 = vsub.f32 %v957, %v973
        %v990 = vsub.f32 %v958, %v974
        %v991 = vsub.f32 %v959, %v975
        %v992 = vsub.f32 %v960, %v976
        %v993 = vsub.f32 %v961, %v977
        %v994 = vsub.f32 %v962, %v978
        %v995 = vsub.f32 %v963, %v979
        %v996 = vsub.f32 %v964, %v980
        %v997 = vsub.f32 %v965, %v981
        %v998 = vadd.f32 %v982, %v984
        %v999 = vadd.f32 %v998, %v986
        %v1000 = vadd.f32 %v999, %v988
        %v1001 = vadd.f32 %v1000, %v990
        %v1002 = vadd.f32 %v1001, %v992
        %v1003 = vadd.f32 %v1002, %v994
        %v1004 = vadd.f32 %v1003, %v996
        %v1005 = vrot.slane %v1004, 4
        %v1006 = vadd.f32 %v1004, %v1005
        %v1007 = vrot.slane %v1006, 2
        %v1008 = vadd.f32 %v1006, %v1007
        %v1009 = vrot.slane %v1008, 1
        %v1010 = vadd.f32 %v1008, %v1009
        %v1011 = vadd.f32 %v983, %v985
        %v1012 = vadd.f32 %v1011, %v987
        %v1013 = vadd.f32 %v1012, %v989
        %v1014 = vadd.f32 %v1013, %v991
        %v1015 = vadd.f32 %v1014, %v993
        %v1016 = vadd.f32 %v1015, %v995
        %v1017 = vadd.f32 %v1016, %v997
        %v1018 = vrot.slane %v1017, 4
        %v1019 = vadd.f32 %v1017, %v1018
        %v1020 = vrot.slane %v1019, 2
        %v1021 = vadd.f32 %v1019, %v1020
        %v1022 = vrot.slane %v1021, 1
        %v1023 = vadd.f32 %v1021, %v1022
        %v1024 = vmul.f32 %v763, %v574
        %v1025 = vmul.f32 %v764, %v575
        %v1026 = vmul.f32 %v765, %v576
        %v1027 = vmul.f32 %v766, %v577
        %v1028 = vmul.f32 %v767, %v578
        %v1029 = vmul.f32 %v768, %v579
        %v1030 = vmul.f32 %v769, %v580
        %v1031 = vmul.f32 %v770, %v581
        %v1032 = vmul.f32 %v771, %v582
        %v1033 = vmul.f32 %v772, %v583
        %v1034 = vmul.f32 %v773, %v584
        %v1035 = vmul.f32 %v774, %v585
        %v1036 = vmul.f32 %v775, %v586
        %v1037 = vmul.f32 %v776, %v587
        %v1038 = vmul.f32 %v777, %v588
        %v1039 = vmul.f32 %v778, %v589
        %v1040 = vmul.f32 %v780, %v557
        %v1041 = vmul.f32 %v781, %v558
        %v1042 = vmul.f32 %v782, %v559
        %v1043 = vmul.f32 %v783, %v560
        %v1044 = vmul.f32 %v784, %v561
        %v1045 = vmul.f32 %v785, %v562
        %v1046 = vmul.f32 %v786, %v563
        %v1047 = vmul.f32 %v787, %v564
        %v1048 = vmul.f32 %v788, %v565
        %v1049 = vmul.f32 %v789, %v566
        %v1050 = vmul.f32 %v790, %v567
        %v1051 = vmul.f32 %v791, %v568
        %v1052 = vmul.f32 %v792, %v569
        %v1053 = vmul.f32 %v793, %v570
        %v1054 = vmul.f32 %v794, %v571
        %v1055 = vmul.f32 %v795, %v572
        %v1056 = vadd.f32 %v1024, %v1040
        %v1057 = vadd.f32 %v1025, %v1041
        %v1058 = vadd.f32 %v1026, %v1042
        %v1059 = vadd.f32 %v1027, %v1043
        %v1060 = vadd.f32 %v1028, %v1044
        %v1061 = vadd.f32 %v1029, %v1045
        %v1062 = vadd.f32 %v1030, %v1046
        %v1063 = vadd.f32 %v1031, %v1047
        %v1064 = vadd.f32 %v1032, %v1048
        %v1065 = vadd.f32 %v1033, %v1049
        %v1066 = vadd.f32 %v1034, %v1050
        %v1067 = vadd.f32 %v1035, %v1051
        %v1068 = vadd.f32 %v1036, %v1052
        %v1069 = vadd.f32 %v1037, %v1053
        %v1070 = vadd.f32 %v1038, %v1054
        %v1071 = vadd.f32 %v1039, %v1055
        %v1072 = vadd.f32 %v1056, %v1058
        %v1073 = vadd.f32 %v1072, %v1060
        %v1074 = vadd.f32 %v1073, %v1062
        %v1075 = vadd.f32 %v1074, %v1064
        %v1076 = vadd.f32 %v1075, %v1066
        %v1077 = vadd.f32 %v1076, %v1068
        %v1078 = vadd.f32 %v1077, %v1070
        %v1079 = vrot.slane %v1078, 4
        %v1080 = vadd.f32 %v1078, %v1079
        %v1081 = vrot.slane %v1080, 2
        %v1082 = vadd.f32 %v1080, %v1081
        %v1083 = vrot.slane %v1082, 1
        %v1084 = vadd.f32 %v1082, %v1083
        %v1085 = vadd.f32 %v1057, %v1059
        %v1086 = vadd.f32 %v1085, %v1061
        %v1087 = vadd.f32 %v1086, %v1063
        %v1088 = vadd.f32 %v1087, %v1065
        %v1089 = vadd.f32 %v1088, %v1067
        %v1090 = vadd.f32 %v1089, %v1069
        %v1091 = vadd.f32 %v1090, %v1071
        %v1092 = vrot.slane %v1091, 4
        %v1093 = vadd.f32 %v1091, %v1092
        %v1094 = vrot.slane %v1093, 2
        %v1095 = vadd.f32 %v1093, %v1094
        %v1096 = vrot.slane %v1095, 1
        %v1097 = vadd.f32 %v1095, %v1096
        %v1098 = vmul.f32 %v1010, %v1010
        %v1099 = vmul.f32 %v1023, %v1023
        %v1100 = vmul.f32 %v1084, %v1084
        %v1101 = vmul.f32 %v1097, %v1097
        %v1102 = vadd.f32 %v1098, %v1100
        %v1103 = vadd.f32 %v1099, %v1101
        %v1104 = vadd.f32 %v948, %v1102
        %v1105 = vadd.f32 %v949, %v1103
        %v1106 = vsub.f32 %v1104, %v1102
        %v1107 = vsub.f32 %v1105, %v1103
        %v1108 = vadd.f32 %v1106, 0.2
        %v1109 = vadd.f32 %v1107, 0.2
        %v1110 = vrcp.pop %v1108
        %v1111 = vmul.f32 %v1102, %v1110
        %v1112 = vrcp.pop %v1109
        %v1113 = vmul.f32 %v1103, %v1112
        %v1114 = vadd.f32 %v1111, 1.0
        %v1115 = vadd.f32 %v1113, 1.0
        %v1116 = vlog2.pop %v1114
        %v1117 = vmul.f32 %v1116, 0.6931472
        %v1118 = vlog2.pop %v1115
        %v1119 = vmul.f32 %v1118, 0.6931472
        %v1120 = vmul.f32 %v1117, 1.442695
        %v1121 = vmul.f32 %v1119, 1.442695
        %v1122 = vadd.f32 %v760, %v1120
        %v1123 = vadd.f32 %v761, %v1121
        %v1126 = vcombine.low %v1122, %v1123
        %v1128 = vunpack.c.l.s4 1966171168
        %v1129 = vunpack.c.0.s8 %v1128
        %v1130 = vlaneseq
        %v1131 = vshrl.u32 %v1130, 7
        %v1132 = vsub.s32 %v1129, %v1131
        %v1133 = vrot.slane %v1126, %v1132
        %v1135 = vunpack.c.l.s4 1966171168
        %v1136 = vunpack.c.0.s8 %v1135
        %v1137 = vlaneseq
        %v1138 = vshrl.u32 %v1137, 7
        %v1139 = vsub.s32 %v1136, %v1138
        %v1140 = vrot.slane %v1133, %v1139
        %v1142 = vlaneseq
        %vm1143 = vcmp.ge.s32.totalorder %v1142, 0
        %vm1144 = vcmp.lt.s32.totalorder %v1142, 256
        %vm1145 = vmand %vm1143, %vm1144
        %1146 = vst.msk [vmem:[%s332] sm:$0x3] %vm1145, %v1140
        %s1147 = sand.u32 %s139, 1
        %s1148 = scalar_lea.sflag [#allocation4], %s1147
        %s1149 = sand.u32 %s139, 1
        %s1150 = smul.addr %s1149, 2
        %s1151 = scalar_lea.vmem [#allocation10], %s1150
        // Predicated region
        $region53: #{tpu_custom_call.1} parent=35 // pred_check
          %p1152 = pneg %p149
        $region54: #{tpu_custom_call.1} parent=35 // pred_check_branch
          %1154 = sbr.rel (%p1152) target = $region56
        $region55: #{tpu_custom_call.1} parent=35 // pred_region
          %s1155 = smul.u32 2, %s27
          %s1157 = ssub.s32 32, 32
          %1158 = vsyncadd %s1148, %s1157
          %s1159 = smul.addr %s1155, 16
          %s1160 = scalar_lea.hbm %s4, %s1159
          %s1162 = sshll.u32 %s1151, 4
          %s1163 = int_to_ptr.vmem [resolvable:$true] %s1162
          %1165 = dma.vmem_to_hbm [thread:$0]  %s1163, 32, %s1160, %s1148
        $region56: #{tpu_custom_call.1} parent=35 // pred_fallthru
          _
      $region36: #{tpu_custom_call.1} parent=5 // pred_fallthru
        _
      %p1166 = scmp.le.s32.totalorder 2, %s22
      // Predicated region
      $region57: #{tpu_custom_call.1} parent=5 // pred_check
        %p1167 = pneg %p1166
      $region58: #{tpu_custom_call.1} parent=5 // pred_check_branch
        %1169 = sbr.rel (%p1167) target = $region60
      $region59: #{tpu_custom_call.1} parent=5 // pred_region
        %s1170 = ssub.s32 %s22, 2
        // Predicated region
        $region61: #{tpu_custom_call.1} parent=59 // pred_check
          %p1171 = pneg %p155
        $region62: #{tpu_custom_call.1} parent=59 // pred_check_branch
          %1173 = sbr.rel (%p1171) target = $region64
        $region63: #{tpu_custom_call.1} parent=59 // pred_region
          %s1174 = sand.u32 %s140, 1
          %s1175 = scalar_lea.sflag [#allocation4], %s1174
          %s1176 = sand.u32 %s140, 1
          %s1177 = smul.addr %s1176, 2
          %s1178 = scalar_lea.vmem [#allocation10], %s1177
          %1179 = dma.done %s1175, 32
        $region64: #{tpu_custom_call.1} parent=59 // pred_fallthru
          _
      $region60: #{tpu_custom_call.1} parent=5 // pred_fallthru
        _
    $region6: #{tpu_custom_call.1} parent=1 // loop_footer
      %s26 = sadd.s32 1, %s22
    $region7: #{tpu_custom_call.1} parent=1 // loop_footer_branch
      %21 = sbr.rel target = $region3
    $region8: #{tpu_custom_call.1} parent=1 // loop_exit
      _
    %1180 = vsyncpa [#allocation3], 1
    %s1181 = scalar_lea.sflag [#allocation3], 1
    %1182 = vsyncpa %s1181, 1
    %1183 = vsyncpa [#allocation6], 1
    %s1184 = scalar_lea.sflag [#allocation6], 1
    %1185 = vsyncpa %s1184, 1
    %1186 = vsyncpa [#allocation9], 1
    %s1187 = scalar_lea.sflag [#allocation9], 1
    %1188 = vsyncpa %s1187, 1
    %1189 = vsyncpa [#allocation4], 1
    %s1190 = scalar_lea.sflag [#allocation4], 1
    %1191 = vsyncpa %s1190, 1

</llo_original>
